<compile_context>
chip_gen: v6e
topology: v6e:2x2x1
jax: 0.10.0
libtpu: 0.0.40
codegen_flags: <defaults>
</compile_context>

<pallas_src>
import math
from functools import partial

import jax
import jax.numpy as jnp
from jax.experimental import pallas as pl
from jax.experimental.pallas import tpu as pltpu


L2_FUSE_THRESHOLD = 128  # below this hidden_dim, fuse layer 2 as a block-diag matmul


# ----------------------------------------------------------------------------
# Kernel factories
# ----------------------------------------------------------------------------
def _make_acts_kernel(obs_dim, act_dim, H, fuse_l2):
    """Kernel emitting ONLY the lane-dense (bm, 4H) activation slab.

    q1/q2 are recovered in the wrapper from the h2 slices with a tiny XLA dot,
    so the kernel never emits a narrow masked-store output."""
    H2 = 2 * H

    def kernel(obs_ref, a_ref, w1_ref, b1_ref, w2_ref, b2_ref, act_ref, xu_ref):
        # Assemble xu = [obs | a] in VMEM scratch -> single K=(obs+act) MXU pass.
        xu_ref[:, :obs_dim] = obs_ref[...]
        xu_ref[:, obs_dim:] = a_ref[...]

        h1 = jnp.dot(xu_ref[...], w1_ref[...], preferred_element_type=jnp.float32)
        h1 = jnp.maximum(h1 + b1_ref[...], 0.0)              # (bm, 2H) = [h1_q1 | h1_q2]

        if fuse_l2:
            # block-diagonal weight: one K=N=2H pass, hidden in MXU padding at small H
            h2 = jnp.dot(h1, w2_ref[...], preferred_element_type=jnp.float32)
        else:
            # large H: two (H, H) matmuls, no zero-padded FLOPs
            h2a = jnp.dot(h1[:, :H], w2_ref[0], preferred_element_type=jnp.float32)
            h2b = jnp.dot(h1[:, H:], w2_ref[1], preferred_element_type=jnp.float32)
            h2 = jnp.concatenate([h2a, h2b], axis=-1)
        h2 = jnp.maximum(h2 + b2_ref[...], 0.0)               # (bm, 2H) = [h2_q1 | h2_q2]

        # Lane-dense slab: [h1_q1 | h1_q2 | h2_q1 | h2_q2] -> (bm, 4H)
        act_ref[:, :H2] = h1.astype(act_ref.dtype)
        act_ref[:, H2:] = h2.astype(act_ref.dtype)

    return kernel


def _make_q_kernel(obs_dim, act_dim, H, fuse_l2):
    """Activations-free kernel (target-critic path): only (bm, 2) q is written."""

    def kernel(obs_ref, a_ref, w1_ref, b1_ref, w2_ref, b2_ref, w3_ref, b3_ref,
               q_ref, xu_ref):
        xu_ref[:, :obs_dim] = obs_ref[...]
        xu_ref[:, obs_dim:] = a_ref[...]

        h1 = jnp.dot(xu_ref[...], w1_ref[...], preferred_element_type=jnp.float32)
        h1 = jnp.maximum(h1 + b1_ref[...], 0.0)

        if fuse_l2:
            h2 = jnp.dot(h1, w2_ref[...], preferred_element_type=jnp.float32)
        else:
            h2a = jnp.dot(h1[:, :H], w2_ref[0], preferred_element_type=jnp.float32)
            h2b = jnp.dot(h1[:, H:], w2_ref[1], preferred_element_type=jnp.float32)
            h2 = jnp.concatenate([h2a, h2b], axis=-1)
        h2 = jnp.maximum(h2 + b2_ref[...], 0.0)

        # Output layer on the VPU/XLU (avoid a lane-wasting N=1 MXU matmul).
        prod = h2 * w3_ref[...]
        q_ref[:, 0:1] = jnp.sum(prod[:, :H], axis=-1, keepdims=True) + b3_ref[:, 0:1]
        q_ref[:, 1:2] = jnp.sum(prod[:, H:], axis=-1, keepdims=True) + b3_ref[:, 1:2]

    return kernel


# ----------------------------------------------------------------------------
# Tiling / VMEM helpers
# ----------------------------------------------------------------------------
def _batch_tile(B, cap=2048):
    """Multiple-of-8 batch tile, <= cap, with >= 2 grid steps whenever B >= 16
    (so the 'parallel' batch axis can shard across v7x's two TensorCores)."""
    if B < 16:
        return B                      # block == full array dim is always legal
    bm = min(cap, (B // 2) // 8 * 8)
    return max(bm, 8)


def _vmem_limit_bytes(bm, din, out_cols, weights):
    """Explicit VMEM budget: double-buffered batch tiles + xu scratch + weights."""
    tile_bytes = bm * (din + out_cols) * 4 * 2     # obs+a in, out slab (double-buffered)
    tile_bytes += bm * din * 4                     # xu scratch
    w_bytes = sum(int(w.size) for w in weights) * 4 * 2
    total = tile_bytes + w_bytes + (8 << 20)       # generous slack for Mosaic internals
    return int(min(max(total, 16 << 20), 64 << 20))


def _const_block_spec(arr):
    nd = arr.ndim
    return pl.BlockSpec(arr.shape, lambda i, _nd=nd: (0,) * _nd)


# ----------------------------------------------------------------------------
# Pallas wrappers
# ----------------------------------------------------------------------------
def _critic_acts_pallas(pk, obs, a, act_dtype):
    """Both heads, layers 1-2, one fused kernel; returns the (B, 4H) slab."""
    B, obs_dim = obs.shape
    act_dim = a.shape[1]
    din = obs_dim + act_dim
    assert pk["w1"].shape[0] == din, "packed W1 rows must equal obs_dim + act_dim"
    H2 = pk["b1"].shape[1]
    H = H2 // 2
    fuse_l2 = pk["w2"].ndim == 2

    bm = _batch_tile(B)
    grid = (pl.cdiv(B, bm),)
    bmap = lambda i: (i, 0)

    kernel = _make_acts_kernel(obs_dim, act_dim, H, fuse_l2)
    acts = pl.pallas_call(
        kernel,
        grid=grid,
        in_specs=[
            pl.BlockSpec((bm, obs_dim), bmap),
            pl.BlockSpec((bm, act_dim), bmap),
            _const_block_spec(pk["w1"]),
            _const_block_spec(pk["b1"]),
            _const_block_spec(pk["w2"]),
            _const_block_spec(pk["b2"]),
        ],
        out_specs=pl.BlockSpec((bm, 2 * H2), bmap),
        out_shape=jax.ShapeDtypeStruct((B, 2 * H2), act_dtype),
        scratch_shapes=[pltpu.VMEM((bm, din), jnp.float32)],
        compiler_params=pltpu.CompilerParams(
            dimension_semantics=("parallel",),
            vmem_limit_bytes=_vmem_limit_bytes(
                bm, din, 2 * H2, [pk["w1"], pk["b1"], pk["w2"], pk["b2"]]),
        ),
    )(obs, a, pk["w1"], pk["b1"], pk["w2"], pk["b2"])
    return acts


def _critic_q_pallas(pk, obs, a):
    """Activations-free path: returns only the (B, 2) [q1 | q2] output."""
    B, obs_dim = obs.shape
    act_dim = a.shape[1]
    din = obs_dim + act_dim
    assert pk["w1"].shape[0] == din
    H2 = pk["b1"].shape[1]
    H = H2 // 2
    fuse_l2 = pk["w2"].ndim == 2

    bm = _batch_tile(B)
    grid = (pl.cdiv(B, bm),)
    bmap = lambda i: (i, 0)

    kernel = _make_q_kernel(obs_dim, act_dim, H, fuse_l2)
    q = pl.pallas_call(
        kernel,
        grid=grid,
        in_specs=[
            pl.BlockSpec((bm, obs_dim), bmap),
            pl.BlockSpec((bm, act_dim), bmap),
            _const_block_spec(pk["w1"]),
            _const_block_spec(pk["b1"]),
            _const_block_spec(pk["w2"]),
            _const_block_spec(pk["b2"]),
            _const_block_spec(pk["w3"]),
            _const_block_spec(pk["b3"]),
        ],
        out_specs=pl.BlockSpec((bm, 2), bmap),
        out_shape=jax.ShapeDtypeStruct((B, 2), jnp.float32),
        scratch_shapes=[pltpu.VMEM((bm, din), jnp.float32)],
        compiler_params=pltpu.CompilerParams(
            dimension_semantics=("parallel",),
            vmem_limit_bytes=_vmem_limit_bytes(
                bm, din, 2,
                [pk["w1"], pk["b1"], pk["w2"], pk["b2"], pk["w3"], pk["b3"]]),
        ),
    )(obs, a, pk["w1"], pk["b1"], pk["w2"], pk["b2"], pk["w3"], pk["b3"])
    return q


# ----------------------------------------------------------------------------
# Parameter construction (mimics torch.nn.Linear U(-1/sqrt(fan_in), 1/sqrt(fan_in)))
# + one-time packing into the fused kernel layout.
# ----------------------------------------------------------------------------
def _init_linear(key, fan_in, fan_out):
    bound = 1.0 / math.sqrt(fan_in)
    kw, kb = jax.random.split(key)
    # stored as (in, out) == transpose of PyTorch's (out, in) weight
    w = jax.random.uniform(kw, (fan_in, fan_out), jnp.float32, -bound, bound)
    b = jax.random.uniform(kb, (1, fan_out), jnp.float32, -bound, bound)
    return w, b


def init_critic_params(key, critic_input_dim, hidden_dim):
    params = {}
    for name in ("q1", "q2"):
        key, k1, k2, k3 = jax.random.split(key, 4)
        w1, b1 = _init_linear(k1, critic_input_dim, hidden_dim)
        w2, b2 = _init_linear(k2, hidden_dim, hidden_dim)
        w3, b3 = _init_linear(k3, hidden_dim, 1)
        params[name] = dict(w1=w1, b1=b1, w2=w2, b2=b2, w3=w3, b3=b3)
    return params


def pack_critic_params(raw):
    """Fuse both heads into the kernel layout. Arrays only (jit-friendly pytree)."""
    p1, p2 = raw["q1"], raw["q2"]
    H = p1["w1"].shape[1]
    # layer 1: heads concatenated along the output dim -> one (Din, 2H) weight
    w1 = jnp.concatenate([p1["w1"], p2["w1"]], axis=1)            # (Din, 2H)
    b1 = jnp.concatenate([p1["b1"], p2["b1"]], axis=1)            # (1, 2H)
    # layer 2: block-diagonal fusion only while H is small; stacked otherwise
    if H < L2_FUSE_THRESHOLD:
        w2 = (jnp.zeros((2 * H, 2 * H), jnp.float32)
              .at[:H, :H].set(p1["w2"]).at[H:, H:].set(p2["w2"])) # (2H, 2H)
    else:
        w2 = jnp.stack([p1["w2"], p2["w2"]], axis=0)              # (2, H, H)
    b2 = jnp.concatenate([p1["b2"], p2["b2"]], axis=1)            # (1, 2H)
    # layer 3: packed as one row (VPU reduction in the q-only kernel / wrapper dot)
    w3 = jnp.concatenate([p1["w3"][:, 0], p2["w3"][:, 0]])[None]  # (1, 2H)
    b3 = jnp.concatenate([p1["b3"], p2["b3"]], axis=1)            # (1, 2)
    return dict(w1=w1, b1=b1, w2=w2, b2=b2, w3=w3, b3=b3)


# ----------------------------------------------------------------------------
# CriticSAC.forward (single-head, no-context configuration)
# ----------------------------------------------------------------------------
def critic_sac_forward(packed, task_id, obs, a, pre_act_rew=None, ret_context=False,
                       need_activations=True, act_dtype=jnp.float32):
    del task_id, pre_act_rew, ret_context  # unused in the single-head, no-context config
    H = packed["b1"].shape[1] // 2

    if need_activations:
        acts = _critic_acts_pallas(packed, obs, a, act_dtype)
        h1_q1, h1_q2 = acts[:, :H], acts[:, H:2 * H]
        h2_q1, h2_q2 = acts[:, 2 * H:3 * H], acts[:, 3 * H:]
        # Final 1-wide heads computed outside the kernel (tiny XLA dot) so the
        # kernel's only output stays lane-dense (no masked (bm, 2) stores).
        w3, b3 = packed["w3"], packed["b3"]
        q1 = jnp.dot(h2_q1.astype(jnp.float32), w3[0, :H][:, None]) + b3[:, 0:1]
        q2 = jnp.dot(h2_q2.astype(jnp.float32), w3[0, H:][:, None]) + b3[:, 1:2]
        extras1 = {"activations": [h1_q1, h2_q1]}
        extras2 = {"activations": [h1_q2, h2_q2]}
        return q1, q2, extras1, extras2

    # Hot path (e.g. target-critic evaluation): skip the activation slab entirely.
    q = _critic_q_pallas(packed, obs, a)
    return q[:, 0:1], q[:, 1:2], {"activations": []}, {"activations": []}


# pure-JAX reference (raw per-head params), used for correctness checks
def _reference_forward(raw, obs, a):
    xu = jnp.concatenate([obs, a], axis=-1)
    outs, acts = [], []
    for name in ("q1", "q2"):
        p = raw[name]
        h1 = jnp.maximum(jnp.dot(xu, p["w1"], precision="highest") + p["b1"], 0.0)
        h2 = jnp.maximum(jnp.dot(h1, p["w2"], precision="highest") + p["b2"], 0.0)
        outs.append(jnp.dot(h2, p["w3"], precision="highest") + p["b3"])
        acts.append((h1, h2))
    return outs, acts


if __name__ == "__main__":
    fwd = jax.jit(critic_sac_forward,
                  static_argnames=("need_activations", "ret_context", "act_dtype"))

    def run_case(B, obs_dim, act_dim, hidden_dim, case):
        key = jax.random.fold_in(jax.random.PRNGKey(0), case)
        kp, ko, ka = jax.random.split(key, 3)
        raw = init_critic_params(kp, obs_dim + act_dim, hidden_dim)
        packed = pack_critic_params(raw)
        obs = jax.random.normal(ko, (B, obs_dim), jnp.float32)
        a = jax.random.normal(ka, (B, act_dim), jnp.float32)
        task_id = jnp.zeros((B,), jnp.int32)

        # full forward (activation slab path)
        q1, q2, e1, e2 = fwd(packed, task_id, obs, a)
        jax.block_until_ready((q1, q2, e1, e2))
        # activations-free path (target-critic style)
        q1b, q2b, _, _ = fwd(packed, task_id, obs, a, need_activations=False)
        jax.block_until_ready((q1b, q2b))

        (r1, r2), ((rh11, rh12), (rh21, rh22)) = _reference_forward(raw, obs, a)
        tol = dict(atol=1e-2, rtol=1e-2)
        assert q1.shape == (B, 1) and q2.shape == (B, 1)
        assert e1["activations"][0].shape == (B, hidden_dim)
        assert jnp.allclose(q1, r1, **tol) and jnp.allclose(q2, r2, **tol)
        assert jnp.allclose(q1b, r1, **tol) and jnp.allclose(q2b, r2, **tol)
        assert jnp.allclose(e1["activations"][0], rh11, **tol)
        assert jnp.allclose(e1["activations"][1], rh12, **tol)
        assert jnp.allclose(e2["activations"][0], rh21, **tol)
        assert jnp.allclose(e2["activations"][1], rh22, **tol)

    # Case 1: small shapes consistent with the module (fused block-diag layer 2).
    run_case(B=8, obs_dim=16, act_dim=4, hidden_dim=32, case=1)
    # Case 2: larger hidden_dim (non-fused layer 2), multi-step grid with a partial
    # last batch tile and odd feature dims (exercises the robust tiling path).
    run_case(B=72, obs_dim=17, act_dim=6, hidden_dim=128, case=2)

    print("KERNEL_OK")
</pallas_src>

<mosaic_0001>
module attributes {stable_mosaic.version = 11 : i64} {
  func.func @kernel(%arg0: i32, %arg1: memref<8x16xf32, #tpu.memory_space<vmem>>, %arg2: memref<8x4xf32, #tpu.memory_space<vmem>>, %arg3: memref<20x64xf32, #tpu.memory_space<vmem>>, %arg4: memref<1x64xf32, #tpu.memory_space<vmem>>, %arg5: memref<64x64xf32, #tpu.memory_space<vmem>>, %arg6: memref<1x64xf32, #tpu.memory_space<vmem>>, %arg7: memref<8x128xf32, #tpu.memory_space<vmem>>, %arg8: memref<8x20xf32, #tpu.memory_space<vmem>>) attributes {dimension_semantics = [#tpu.dimension_semantics<parallel>], iteration_bounds = array<i64: 1>, scalar_prefetch = 0 : i64, scratch_operands = 1 : i64, tpu.core_type = #tpu.core_type<tc>, window_params = [{transform_indices = @transform_0, window_bounds = array<i64: 8, 16>}, {transform_indices = @transform_1, window_bounds = array<i64: 8, 4>}, {pipeline_mode = #tpu.pipeline_mode<synchronous>, transform_indices = @transform_2, window_bounds = array<i64: 20, 64>}, {pipeline_mode = #tpu.pipeline_mode<synchronous>, transform_indices = @transform_3, window_bounds = array<i64: 1, 64>}, {pipeline_mode = #tpu.pipeline_mode<synchronous>, transform_indices = @transform_4, window_bounds = array<i64: 64, 64>}, {pipeline_mode = #tpu.pipeline_mode<synchronous>, transform_indices = @transform_5, window_bounds = array<i64: 1, 64>}, {transform_indices = @transform_6, window_bounds = array<i64: 8, 128>}]} {
    %c0 = arith.constant 0 : index
    %c0_0 = arith.constant 0 : index
    %0 = vector.load %arg1[%c0, %c0_0] : memref<8x16xf32, #tpu.memory_space<vmem>>, vector<8x16xf32>
    %c0_1 = arith.constant 0 : index
    %c0_2 = arith.constant 0 : index
    %1 = vector.load %arg8[%c0_1, %c0_2] : memref<8x20xf32, #tpu.memory_space<vmem>>, vector<8x16xf32>
    tpu.vector_store %arg8[%c0_1, %c0_2], %0 {strides = array<i32>} : memref<8x20xf32, #tpu.memory_space<vmem>>, vector<8x16xf32>,
    %c0_3 = arith.constant 0 : index
    %c0_4 = arith.constant 0 : index
    %2 = vector.load %arg2[%c0_3, %c0_4] : memref<8x4xf32, #tpu.memory_space<vmem>>, vector<8x4xf32>
    %c0_5 = arith.constant 0 : index
    %c16 = arith.constant 16 : index
    %3 = vector.load %arg8[%c0_5, %c16] : memref<8x20xf32, #tpu.memory_space<vmem>>, vector<8x4xf32>
    tpu.vector_store %arg8[%c0_5, %c16], %2 {strides = array<i32>} : memref<8x20xf32, #tpu.memory_space<vmem>>, vector<8x4xf32>,
    %c0_6 = arith.constant 0 : index
    %c0_7 = arith.constant 0 : index
    %4 = vector.load %arg8[%c0_6, %c0_7] : memref<8x20xf32, #tpu.memory_space<vmem>>, vector<8x20xf32>
    %c0_8 = arith.constant 0 : index
    %c0_9 = arith.constant 0 : index
    %5 = vector.load %arg3[%c0_8, %c0_9] : memref<20x64xf32, #tpu.memory_space<vmem>>, vector<20x64xf32>
    %cst = arith.constant dense<0.000000e+00> : vector<8x64xf32>
    %6 = tpu.matmul %4, %5, %cst {dimension_numbers = #tpu.dot_dimension_numbers<[1], [0], [0], [1], [0, 0, 1, 1], [], []>} : vector<8x20xf32>, vector<20x64xf32>, vector<8x64xf32> -> vector<8x64xf32>
    %c0_10 = arith.constant 0 : index
    %c0_11 = arith.constant 0 : index
    %7 = vector.load %arg4[%c0_10, %c0_11] : memref<1x64xf32, #tpu.memory_space<vmem>>, vector<1x64xf32>
    %8 = vector.broadcast %7 : vector<1x64xf32> to vector<8x64xf32>
    %9 = arith.addf %6, %8 : vector<8x64xf32>
    %cst_12 = arith.constant 0.000000e+00 : f32
    %10 = vector.broadcast %cst_12 : f32 to vector<8x64xf32>
    %11 = arith.maximumf %9, %10 : vector<8x64xf32>
    %c0_13 = arith.constant 0 : index
    %c0_14 = arith.constant 0 : index
    %12 = vector.load %arg5[%c0_13, %c0_14] : memref<64x64xf32, #tpu.memory_space<vmem>>, vector<64x64xf32>
    %cst_15 = arith.constant dense<0.000000e+00> : vector<8x64xf32>
    %13 = tpu.matmul %11, %12, %cst_15 {dimension_numbers = #tpu.dot_dimension_numbers<[1], [0], [0], [1], [0, 0, 1, 1], [], []>} : vector<8x64xf32>, vector<64x64xf32>, vector<8x64xf32> -> vector<8x64xf32>
    %c0_16 = arith.constant 0 : index
    %c0_17 = arith.constant 0 : index
    %14 = vector.load %arg6[%c0_16, %c0_17] : memref<1x64xf32, #tpu.memory_space<vmem>>, vector<1x64xf32>
    %15 = vector.broadcast %14 : vector<1x64xf32> to vector<8x64xf32>
    %16 = arith.addf %13, %15 : vector<8x64xf32>
    %cst_18 = arith.constant 0.000000e+00 : f32
    %17 = vector.broadcast %cst_18 : f32 to vector<8x64xf32>
    %18 = arith.maximumf %16, %17 : vector<8x64xf32>
    %c0_19 = arith.constant 0 : index
    %c0_20 = arith.constant 0 : index
    %19 = vector.load %arg7[%c0_19, %c0_20] : memref<8x128xf32, #tpu.memory_space<vmem>>, vector<8x64xf32>
    tpu.vector_store %arg7[%c0_19, %c0_20], %11 {strides = array<i32>} : memref<8x128xf32, #tpu.memory_space<vmem>>, vector<8x64xf32>,
    %c0_21 = arith.constant 0 : index
    %c64 = arith.constant 64 : index
    %20 = vector.load %arg7[%c0_21, %c64] : memref<8x128xf32, #tpu.memory_space<vmem>>, vector<8x64xf32>
    tpu.vector_store %arg7[%c0_21, %c64], %18 {strides = array<i32>} : memref<8x128xf32, #tpu.memory_space<vmem>>, vector<8x64xf32>,
    return
  }
  func.func @transform_0(%arg0: i32) -> (i32, i32) {
    %c0_i32 = arith.constant 0 : i32
    %c0_i32_0 = arith.constant 0 : i32
    return %arg0, %c0_i32 : i32, i32
  }
  func.func @transform_1(%arg0: i32) -> (i32, i32) {
    %c0_i32 = arith.constant 0 : i32
    %c0_i32_0 = arith.constant 0 : i32
    return %arg0, %c0_i32 : i32, i32
  }
  func.func @transform_2(%arg0: i32) -> (i32, i32) {
    %c0_i32 = arith.constant 0 : i32
    %c0_i32_0 = arith.constant 0 : i32
    %c0_i32_1 = arith.constant 0 : i32
    return %c0_i32, %c0_i32_0 : i32, i32
  }
  func.func @transform_3(%arg0: i32) -> (i32, i32) {
    %c0_i32 = arith.constant 0 : i32
    %c0_i32_0 = arith.constant 0 : i32
    %c0_i32_1 = arith.constant 0 : i32
    return %c0_i32, %c0_i32_0 : i32, i32
  }
  func.func @transform_4(%arg0: i32) -> (i32, i32) {
    %c0_i32 = arith.constant 0 : i32
    %c0_i32_0 = arith.constant 0 : i32
    %c0_i32_1 = arith.constant 0 : i32
    return %c0_i32, %c0_i32_0 : i32, i32
  }
  func.func @transform_5(%arg0: i32) -> (i32, i32) {
    %c0_i32 = arith.constant 0 : i32
    %c0_i32_0 = arith.constant 0 : i32
    %c0_i32_1 = arith.constant 0 : i32
    return %c0_i32, %c0_i32_0 : i32, i32
  }
  func.func @transform_6(%arg0: i32) -> (i32, i32) {
    %c0_i32 = arith.constant 0 : i32
    %c0_i32_0 = arith.constant 0 : i32
    return %arg0, %c0_i32 : i32, i32
  }
}

</mosaic_0001>

<llo_original>
// kernel: critic_sac_forward.1
$region0: #{critic_sac_forward.1}
  #allocation0 [shape = 'u32[]', space=smem, size = 0x4, offset = 0x4, fixed_abs, tag = 'smem constant byte address 0x4 - core index']
  #allocation1 [shape = 'u32[144,128]{1,0:T(1,128)}', space=vmem, size = 0x12000, scoped, tag = 'internal scratch']
  #allocation2 [shape = 'f32[8,20]{1,0:T(8,128)}', space=vmem, size = 0x1000, scoped, tag = 'scratch operand']
  %s0 = inlined_call_operand.vmem [shape: f32[8,16], index: 0, kind: input, shape index: {}]
  %s1 = inlined_call_operand.vmem [shape: f32[8,4], index: 1, kind: input, shape index: {}]
  %s2 = inlined_call_operand.hbm [shape: f32[20,64], index: 2, kind: input, shape index: {}]
  %s3 = inlined_call_operand.vmem [shape: f32[1,64], index: 3, kind: input, shape index: {}]
  %s4 = inlined_call_operand.hbm [shape: f32[64,64], index: 4, kind: input, shape index: {}]
  %s5 = inlined_call_operand.vmem [shape: f32[1,64], index: 5, kind: input, shape index: {}]
  %s6 = inlined_call_operand.vmem [shape: f32[8,128], index: 6, kind: output, shape index: {}]
  %s7 = sld [smem:[#allocation0]]
  $region42: #{critic_sac_forward.1} parent=0
    _
  %s9 = ssub.s32 1, %s7
  %s10 = scalar_select 0, %s9, %s7
  $region1: #{critic_sac_forward.1} parent=0
    #allocation3 [shape = 'u8[12288]{0}', space=vmem, size = 0x3000, scoped, tag = 'input window, operand 2, single buffered']
    #allocation4 [shape = 's32[1]{0}', space=sflag, size = 0x4, scoped, tag = 'scoped memory for critic_sac_forward.1']
    #allocation5 [shape = 'u8[32768]{0}', space=vmem, size = 0x8000, scoped, tag = 'input window, operand 4, single buffered']
    #allocation6 [shape = 's32[1]{0}', space=sflag, size = 0x4, scoped, tag = 'scoped memory for critic_sac_forward.1']
    %11 = vsyncpa [#allocation4], 0
    %12 = vsyncpa [#allocation6], 0
    // Predicated region
    $region2: #{critic_sac_forward.1} parent=1 // pred_check
      _
    $region3: #{critic_sac_forward.1} parent=1 // pred_check_branch
      %14 = sbr.rel (0) target = $region5
    $region4: #{critic_sac_forward.1} parent=1 // pred_region
      _
    $region5: #{critic_sac_forward.1} parent=1 // pred_fallthru
      _
    // Predicated region
    $region6: #{critic_sac_forward.1} parent=1 // pred_check
      _
    $region7: #{critic_sac_forward.1} parent=1 // pred_check_branch
      %16 = sbr.rel (0) target = $region9
    $region8: #{critic_sac_forward.1} parent=1 // pred_region
      _
    $region9: #{critic_sac_forward.1} parent=1 // pred_fallthru
      _
    // Predicated region
    $region10: #{critic_sac_forward.1} parent=1 // pred_check
      _
    $region11: #{critic_sac_forward.1} parent=1 // pred_check_branch
      %18 = sbr.rel (0) target = $region13
    $region12: #{critic_sac_forward.1} parent=1 // pred_region
      %s20 = ssub.s32 384, 384
      %21 = vsyncadd [#allocation4], %s20
      %s22 = sshll.u32 [#allocation3], 4
      %s23 = int_to_ptr.vmem [resolvable:$true] %s22
      %28 = dma.hbm_to_vmem [thread:$0]  %s2, 384, %s23, [#allocation4], 128, 128, 8
    $region13: #{critic_sac_forward.1} parent=1 // pred_fallthru
      _
    // Predicated region
    $region14: #{critic_sac_forward.1} parent=1 // pred_check
      _
    $region15: #{critic_sac_forward.1} parent=1 // pred_check_branch
      %30 = sbr.rel (0) target = $region17
    $region16: #{critic_sac_forward.1} parent=1 // pred_region
      _
    $region17: #{critic_sac_forward.1} parent=1 // pred_fallthru
      _
    // Predicated region
    $region18: #{critic_sac_forward.1} parent=1 // pred_check
      _
    $region19: #{critic_sac_forward.1} parent=1 // pred_check_branch
      %32 = sbr.rel (0) target = $region21
    $region20: #{critic_sac_forward.1} parent=1 // pred_region
      %s34 = ssub.s32 1024, 1024
      %35 = vsyncadd [#allocation6], %s34
      %s36 = sshll.u32 [#allocation5], 4
      %s37 = int_to_ptr.vmem [resolvable:$true] %s36
      %42 = dma.hbm_to_vmem [thread:$0]  %s4, 1024, %s37, [#allocation6], 128, 128, 8
    $region21: #{critic_sac_forward.1} parent=1 // pred_fallthru
      _
    // Predicated region
    $region22: #{critic_sac_forward.1} parent=1 // pred_check
      _
    $region23: #{critic_sac_forward.1} parent=1 // pred_check_branch
      %44 = sbr.rel (0) target = $region25
    $region24: #{critic_sac_forward.1} parent=1 // pred_region
      _
    $region25: #{critic_sac_forward.1} parent=1 // pred_fallthru
      _
    // Predicated region
    $region26: #{critic_sac_forward.1} parent=1 // pred_check
      _
    $region27: #{critic_sac_forward.1} parent=1 // pred_check_branch
      %46 = sbr.rel (0) target = $region29
    $region28: #{critic_sac_forward.1} parent=1 // pred_region
      %47 = dma.done [#allocation4], 384
    $region29: #{critic_sac_forward.1} parent=1 // pred_fallthru
      _
    // Predicated region
    $region30: #{critic_sac_forward.1} parent=1 // pred_check
      _
    $region31: #{critic_sac_forward.1} parent=1 // pred_check_branch
      %49 = sbr.rel (0) target = $region33
    $region32: #{critic_sac_forward.1} parent=1 // pred_region
      %50 = dma.done [#allocation6], 1024
    $region33: #{critic_sac_forward.1} parent=1 // pred_fallthru
      _
    %v51 = vld [vmem:[%s0] sm:$0xff]
    %vm52 = vcmask 130048
    %53 = vst.msk [vmem:[#allocation2] sm:$0xff] %vm52, %v51
    %v54 = vld [vmem:[%s1] sm:$0xff]
    %56 = vrot.lane.b32.xlu0 %v54, 16
    %v57 = vpop.permute.xlu0 %56
    %vm59 = vcmask 162944
    %60 = vst.msk [vmem:[#allocation2] sm:$0xff] %vm59, %v57
    %v61 = vld [vmem:[#allocation2] sm:$0xff]
    %v62 = vld [vmem:[#allocation3] sm:$0xff]
    %v63 = vld [vmem:[#allocation3 + $0x8] sm:$0xff]
    %v64 = vld [vmem:[#allocation3 + $0x10] sm:$0xf]
    %v65 = vld [vmem:[%s3] sm:$0x1]
    %v67 = vlaneseq
    %v68 = vshrl.u32 %v67, 7
    %v69 = vsub.s32 0, %v68
    %v70 = vrot.slane %v65, %v69
    %vm72 = vcmask 162816
    %v74 = vsel %vm72, %v61, 0
    %vm76 = vcmask 1043456
    %v78 = vsel %vm76, %v64, 0
    %80 = vmatprep.subr.mxu0 0.0
    %81 = vmatpush1.msra.mxu0 0.0
    %82 = vmatprep.subr.mxu0 0.0
    %83 = vmatpush1.msra.mxu0 0.0
    %84 = vmatprep.subr.mxu0 0.0
    %85 = vmatpush1.msra.mxu0 0.0
    %86 = vmatprep.subr.mxu0 0.0
    %87 = vmatpush1.msra.mxu0 0.0
    %88 = vmatprep.subr.mxu0 0.0
    %89 = vmatpush1.msra.mxu0 0.0
    %90 = vmatprep.subr.mxu0 0.0
    %91 = vmatpush1.msra.mxu0 0.0
    %92 = vmatprep.subr.mxu0 0.0
    %93 = vmatpush1.msra.mxu0 0.0
    %94 = vmatprep.subr.mxu0 0.0
    %95 = vmatpush1.msra.mxu0 0.0
    %96 = vmatprep.subr.mxu0 0.0
    %97 = vmatpush1.msra.mxu0 0.0
    %98 = vmatprep.subr.mxu0 0.0
    %99 = vmatpush1.msra.mxu0 0.0
    %100 = vmatprep.subr.mxu0 0.0
    %101 = vmatpush1.msra.mxu0 0.0
    %102 = vmatprep.subr.mxu0 0.0
    %103 = vmatpush1.msra.mxu0 0.0
    %104 = vmatprep.subr.mxu0 0.0
    %105 = vmatpush1.msra.mxu0 0.0
    %106 = vmatprep.subr.mxu0 0.0
    %107 = vmatpush1.msra.mxu0 %v78
    %108 = vmatprep.subr.mxu0 0.0
    %109 = vmatpush1.msra.mxu0 %v63
    %110 = vmatprep.subr.mxu0 0.0
    %111 = vmatpush1.msra.mxu0 %v62
    %112 = vmatprep.subr.mxu0 0.0
    %113 = vmatpush2.msra.mxu0 0.0
    %114 = vmatprep.subr.mxu0 0.0
    %115 = vmatpush2.msra.mxu0 0.0
    %116 = vmatprep.subr.mxu0 0.0
    %117 = vmatpush2.msra.mxu0 0.0
    %118 = vmatprep.subr.mxu0 0.0
    %119 = vmatpush2.msra.mxu0 0.0
    %120 = vmatprep.subr.mxu0 0.0
    %121 = vmatpush2.msra.mxu0 0.0
    %122 = vmatprep.subr.mxu0 0.0
    %123 = vmatpush2.msra.mxu0 0.0
    %124 = vmatprep.subr.mxu0 0.0
    %125 = vmatpush2.msra.mxu0 0.0
    %126 = vmatprep.subr.mxu0 0.0
    %127 = vmatpush2.msra.mxu0 0.0
    %128 = vmatprep.subr.mxu0 0.0
    %129 = vmatpush2.msra.mxu0 0.0
    %130 = vmatprep.subr.mxu0 0.0
    %131 = vmatpush2.msra.mxu0 0.0
    %132 = vmatprep.subr.mxu0 0.0
    %133 = vmatpush2.msra.mxu0 0.0
    %134 = vmatprep.subr.mxu0 0.0
    %135 = vmatpush2.msra.mxu0 0.0
    %136 = vmatprep.subr.mxu0 0.0
    %137 = vmatpush2.msra.mxu0 0.0
    %138 = vmatprep.subr.mxu0 0.0
    %139 = vmatpush2.msra.mxu0 0.0
    %140 = vmatprep.subr.mxu0 0.0
    %141 = vmatpush2.msra.mxu0 0.0
    %142 = vmatprep.subr.mxu0 0.0
    %143 = vmatpush2.msra.mxu0 0.0
    %144 = vmatprep.mubr.f32.mxu0 0.0
    %145 = vmatmul.mubr.f32.gmra.mxu0 %v74
    %v146 = vpop.f32.mrf.mxu0
    %v147 = vadd.f32 %v70, %v146
    %v148 = vpop.f32.mrf.mxu0
    %149 = vdwg.mxu0
    %v150 = vmax.f32 %v147, 0.0
    %v151 = vld [vmem:[#allocation5] sm:$0xff]
    %v152 = vld [vmem:[#allocation5 + $0x8] sm:$0xff]
    %v153 = vld [vmem:[#allocation5 + $0x10] sm:$0xff]
    %v154 = vld [vmem:[#allocation5 + $0x18] sm:$0xff]
    %v155 = vld [vmem:[#allocation5 + $0x20] sm:$0xff]
    %v156 = vld [vmem:[#allocation5 + $0x28] sm:$0xff]
    %v157 = vld [vmem:[#allocation5 + $0x30] sm:$0xff]
    %v158 = vld [vmem:[#allocation5 + $0x38] sm:$0xff]
    %v159 = vld [vmem:[%s5] sm:$0x1]
    %v161 = vlaneseq
    %v162 = vshrl.u32 %v161, 7
    %v163 = vsub.s32 0, %v162
    %v164 = vrot.slane %v159, %v163
    %vm166 = vcmask 523264
    %v168 = vsel %vm166, %v150, 0
    %170 = vmatprep.subr.mxu0 0.0
    %171 = vmatpush1.msra.mxu0 0.0
    %172 = vmatprep.subr.mxu0 0.0
    %173 = vmatpush1.msra.mxu0 0.0
    %174 = vmatprep.subr.mxu0 0.0
    %175 = vmatpush1.msra.mxu0 0.0
    %176 = vmatprep.subr.mxu0 0.0
    %177 = vmatpush1.msra.mxu0 0.0
    %178 = vmatprep.subr.mxu0 0.0
    %179 = vmatpush1.msra.mxu0 0.0
    %180 = vmatprep.subr.mxu0 0.0
    %181 = vmatpush1.msra.mxu0 0.0
    %182 = vmatprep.subr.mxu0 0.0
    %183 = vmatpush1.msra.mxu0 0.0
    %184 = vmatprep.subr.mxu0 0.0
    %185 = vmatpush1.msra.mxu0 0.0
    %186 = vmatprep.subr.mxu0 0.0
    %187 = vmatpush1.msra.mxu0 %v158
    %188 = vmatprep.subr.mxu0 0.0
    %189 = vmatpush1.msra.mxu0 %v157
    %190 = vmatprep.subr.mxu0 0.0
    %191 = vmatpush1.msra.mxu0 %v156
    %192 = vmatprep.subr.mxu0 0.0
    %193 = vmatpush1.msra.mxu0 %v155
    %194 = vmatprep.subr.mxu0 0.0
    %195 = vmatpush1.msra.mxu0 %v154
    %196 = vmatprep.subr.mxu0 0.0
    %197 = vmatpush1.msra.mxu0 %v153
    %198 = vmatprep.subr.mxu0 0.0
    %199 = vmatpush1.msra.mxu0 %v152
    %200 = vmatprep.subr.mxu0 0.0
    %201 = vmatpush1.msra.mxu0 %v151
    %202 = vmatprep.subr.mxu0 0.0
    %203 = vmatpush2.msra.mxu0 0.0
    %204 = vmatprep.subr.mxu0 0.0
    %205 = vmatpush2.msra.mxu0 0.0
    %206 = vmatprep.subr.mxu0 0.0
    %207 = vmatpush2.msra.mxu0 0.0
    %208 = vmatprep.subr.mxu0 0.0
    %209 = vmatpush2.msra.mxu0 0.0
    %210 = vmatprep.subr.mxu0 0.0
    %211 = vmatpush2.msra.mxu0 0.0
    %212 = vmatprep.subr.mxu0 0.0
    %213 = vmatpush2.msra.mxu0 0.0
    %214 = vmatprep.subr.mxu0 0.0
    %215 = vmatpush2.msra.mxu0 0.0
    %216 = vmatprep.subr.mxu0 0.0
    %217 = vmatpush2.msra.mxu0 0.0
    %218 = vmatprep.subr.mxu0 0.0
    %219 = vmatpush2.msra.mxu0 0.0
    %220 = vmatprep.subr.mxu0 0.0
    %221 = vmatpush2.msra.mxu0 0.0
    %222 = vmatprep.subr.mxu0 0.0
    %223 = vmatpush2.msra.mxu0 0.0
    %224 = vmatprep.subr.mxu0 0.0
    %225 = vmatpush2.msra.mxu0 0.0
    %226 = vmatprep.subr.mxu0 0.0
    %227 = vmatpush2.msra.mxu0 0.0
    %228 = vmatprep.subr.mxu0 0.0
    %229 = vmatpush2.msra.mxu0 0.0
    %230 = vmatprep.subr.mxu0 0.0
    %231 = vmatpush2.msra.mxu0 0.0
    %232 = vmatprep.subr.mxu0 0.0
    %233 = vmatpush2.msra.mxu0 0.0
    %234 = vmatprep.mubr.f32.mxu0 0.0
    %235 = vmatmul.mubr.f32.gmra.mxu0 %v168
    %v236 = vpop.f32.mrf.mxu0
    %v237 = vadd.f32 %v164, %v236
    %v238 = vpop.f32.mrf.mxu0
    %239 = vdwg.mxu0
    %v240 = vmax.f32 %v237, 0.0
    %241 = vst.msk [vmem:[%s6] sm:$0xff] %vm166, %v150
    %243 = vrot.lane.b32.xlu0 %v240, 64
    %v244 = vpop.permute.xlu0 %243
    %vm246 = vcmask 1048064
    %247 = vst.msk [vmem:[%s6] sm:$0xff] %vm246, %v244
    // Predicated region
    $region34: #{critic_sac_forward.1} parent=1 // pred_check
      _
    $region35: #{critic_sac_forward.1} parent=1 // pred_check_branch
      %249 = sbr.rel (0) target = $region37
    $region36: #{critic_sac_forward.1} parent=1 // pred_region
      _
    $region37: #{critic_sac_forward.1} parent=1 // pred_fallthru
      _
    // Predicated region
    $region38: #{critic_sac_forward.1} parent=1 // pred_check
      _
    $region39: #{critic_sac_forward.1} parent=1 // pred_check_branch
      %251 = sbr.rel (0) target = $region41
    $region40: #{critic_sac_forward.1} parent=1 // pred_region
      _
    $region41: #{critic_sac_forward.1} parent=1 // pred_fallthru
      _
    %252 = vsyncpa [#allocation4], 1
    %253 = vsyncpa [#allocation6], 1

</llo_original>
